<compile_context>
chip_gen: v5e
topology: v5e:2x2
jax: 0.10.0
libtpu: 0.0.40
codegen_flags: <defaults>
</compile_context>

<pallas_src>
import math

import jax
import jax.numpy as jnp
from jax.experimental import pallas as pl
from jax.experimental.pallas import tpu as pltpu

BIGNET_DIM = 128          # small, lane-aligned stand-in for the homework's BIGNET_DIM
LORA_DIM = 20             # Block hardcodes lora_dim=20
LORA_PAD = 32             # rank zero-padded to 32 (exact math: padded lora_b rows are 0)
GROUP_SIZE = 16
NUM_BLOCKS = 6            # 6 Blocks interleaved with 5 LayerNorms
LAYERS_PER_BLOCK = 3
NUM_LAYERS = NUM_BLOCKS * LAYERS_PER_BLOCK
BATCH = 16
LN_EPS = 1e-5
WA_COLS = BIGNET_DIM + LORA_PAD   # 160: [W | lora_a] packed along N


# ----------------------------------------------------------------------------
# Pallas kernel: one residual Block (+ trailing LayerNorm) per grid step
# ----------------------------------------------------------------------------
def qlora_bignet_kernel(x_ref, wa_ref, bias_ref, lb_ref, g_ref, beta_ref,
                        o_ref, h_ref):
    """Per-grid-step body (grid axis = block index, serial / "arbitrary").

    x_ref    : [B, D]               f32  network input (resident, read at step 0)
    wa_ref   : [3, D, D+LORA_PAD]   bf16 this block's packed [W | lora_a] RHS
    bias_ref : [3, 1, D]            f32  base biases
    lb_ref   : [3, LORA_PAD, D]     bf16 lora_b (rank rows zero-padded)
    g_ref    : [5, 1, D]            f32  LayerNorm gamma (all, resident)
    beta_ref : [5, 1, D]            f32  LayerNorm beta  (all, resident)
    o_ref    : [B, D]               f32  output (written at the last step)
    h_ref    : [B, D]               f32  VMEM scratch carrying activations
    """
    blk = pl.program_id(0)

    @pl.when(blk == 0)
    def _():
        h_ref[...] = x_ref[...]

    r = h_ref[...]                                      # residual input, f32

    def qlora(t, j):
        tb = t.astype(jnp.bfloat16)                     # bf16 MXU path
        # One dot produces base (first D cols) and LoRA z (last LORA_PAD cols).
        bz = jnp.dot(tb, wa_ref[j], preferred_element_type=jnp.float32)
        base = bz[:, :BIGNET_DIM]
        z = bz[:, BIGNET_DIM:]
        lora = jnp.dot(z.astype(jnp.bfloat16), lb_ref[j],
                       preferred_element_type=jnp.float32)
        return base + lora + bias_ref[j]

    t = jnp.maximum(qlora(r, 0), 0.0)
    t = jnp.maximum(qlora(t, 1), 0.0)
    h = qlora(t, 2) + r                                 # residual add

    @pl.when(blk < NUM_BLOCKS - 1)                      # LayerNorm between blocks only
    def _():
        mean = jnp.mean(h, axis=-1, keepdims=True)
        c = h - mean                                    # two-pass variance (torch-like)
        var = jnp.mean(c * c, axis=-1, keepdims=True)
        h_ref[...] = c * jax.lax.rsqrt(var + LN_EPS) * g_ref[blk] + beta_ref[blk]

    @pl.when(blk == NUM_BLOCKS - 1)
    def _():
        o_ref[...] = h.astype(o_ref.dtype)


def qlora_bignet_forward(x, WA, Bias, LB, G, Beta):
    D = BIGNET_DIM
    return pl.pallas_call(
        qlora_bignet_kernel,
        out_shape=jax.ShapeDtypeStruct(x.shape, x.dtype),
        grid_spec=pltpu.PrefetchScalarGridSpec(
            num_scalar_prefetch=0,
            grid=(NUM_BLOCKS,),
            in_specs=[
                pl.BlockSpec((BATCH, D), lambda b: (0, 0)),                       # x (resident)
                pl.BlockSpec((LAYERS_PER_BLOCK, D, WA_COLS), lambda b: (b, 0, 0)),  # [W|A] per block
                pl.BlockSpec((LAYERS_PER_BLOCK, 1, D), lambda b: (b, 0, 0)),        # bias per block
                pl.BlockSpec((LAYERS_PER_BLOCK, LORA_PAD, D), lambda b: (b, 0, 0)), # lora_b per block
                pl.BlockSpec((NUM_BLOCKS - 1, 1, D), lambda b: (0, 0, 0)),          # LN gamma (all)
                pl.BlockSpec((NUM_BLOCKS - 1, 1, D), lambda b: (0, 0, 0)),          # LN beta  (all)
            ],
            out_specs=pl.BlockSpec((BATCH, D), lambda b: (0, 0)),
            scratch_shapes=[pltpu.VMEM((BATCH, D), jnp.float32)],
        ),
        compiler_params=pltpu.CompilerParams(
            dimension_semantics=("arbitrary",)),
    )(x, WA, Bias, LB, G, Beta)


# ----------------------------------------------------------------------------
# Setup glue: 4-bit group quant/dequant of frozen base weights + param packing
# ----------------------------------------------------------------------------
def quant_dequant_4bit(w, group_size=GROUP_SIZE):
    """Linear4Bit-style group-wise 4-bit quantize + dequantize of a weight."""
    out_f, in_f = w.shape
    wg = w.reshape(-1, group_size)
    norm = jnp.maximum(jnp.abs(wg).max(axis=-1, keepdims=True), 1e-8)
    wn = (wg + norm) / (2.0 * norm)                  # map to [0, 1]
    q = jnp.clip(jnp.round(wn * 15.0), 0.0, 15.0)    # 4-bit levels
    deq = (q / 15.0 * 2.0 - 1.0) * norm
    return deq.reshape(out_f, in_f)


def init_params(key):
    """Build stacked, kernel-ready parameters (deterministic, synthetic)."""
    D, R = BIGNET_DIM, LORA_DIM
    keys = jax.random.split(key, NUM_LAYERS)
    bound = 1.0 / math.sqrt(D)            # torch Linear default init bound
    a_bound = math.sqrt(6.0 / D)          # kaiming_uniform_ bound for lora_a

    WAs, Bs, Ls = [], [], []
    for k in keys:
        kw, kb, ka, kl = jax.random.split(k, 4)
        w = jax.random.uniform(kw, (D, D), jnp.float32, -bound, bound)
        w = quant_dequant_4bit(w)                           # frozen 4-bit base
        b = jax.random.uniform(kb, (D,), jnp.float32, -bound, bound)
        a = jax.random.uniform(ka, (R, D), jnp.float32, -a_bound, a_bound)
        # The module zero-inits lora_b; use a small non-zero TEST init so the
        # LoRA matmul path is numerically exercised (same forward math).
        l = 0.01 * jax.random.uniform(kl, (D, R), jnp.float32, -1.0, 1.0)

        # x @ W layout; pack [W.T | lora_a.T(padded)] along N; pad lora_b rows.
        a_p = jnp.zeros((D, LORA_PAD), jnp.float32).at[:, :R].set(a.T)
        l_p = jnp.zeros((LORA_PAD, D), jnp.float32).at[:R, :].set(l.T)
        WAs.append(jnp.concatenate([w.T, a_p], axis=1))     # [D, D+LORA_PAD]
        Bs.append(b.reshape(1, D))
        Ls.append(l_p)

    WA = jnp.stack(WAs).astype(jnp.bfloat16)     # [18, D, D+LORA_PAD]
    Bias = jnp.stack(Bs)                         # [18, 1, D] f32
    LB = jnp.stack(Ls).astype(jnp.bfloat16)      # [18, LORA_PAD, D]
    G = jnp.ones((NUM_BLOCKS - 1, 1, D), jnp.float32)       # LN gamma (ones)
    Beta = jnp.zeros((NUM_BLOCKS - 1, 1, D), jnp.float32)   # LN beta (zeros)
    return WA, Bias, LB, G, Beta


# ----------------------------------------------------------------------------
# Pure-JAX reference (same bf16-in / f32-accumulate recipe) for validation
# ----------------------------------------------------------------------------
def reference_forward(x, WA, Bias, LB, G, Beta):
    h = x
    for blk in range(NUM_BLOCKS):
        r = h
        t = r
        for j in range(LAYERS_PER_BLOCK):
            idx = LAYERS_PER_BLOCK * blk + j
            tb = t.astype(jnp.bfloat16)
            bz = jnp.dot(tb, WA[idx], preferred_element_type=jnp.float32)
            base, z = bz[:, :BIGNET_DIM], bz[:, BIGNET_DIM:]
            lora = jnp.dot(z.astype(jnp.bfloat16), LB[idx],
                           preferred_element_type=jnp.float32)
            t = base + lora + Bias[idx]
            if j < LAYERS_PER_BLOCK - 1:
                t = jnp.maximum(t, 0.0)
        h = t + r
        if blk < NUM_BLOCKS - 1:
            mean = jnp.mean(h, axis=-1, keepdims=True)
            c = h - mean
            var = jnp.mean(c * c, axis=-1, keepdims=True)
            h = c * jax.lax.rsqrt(var + LN_EPS) * G[blk] + Beta[blk]
    return h


# ----------------------------------------------------------------------------
if __name__ == "__main__":
    key = jax.random.PRNGKey(0)
    k_x, k_p = jax.random.split(key)

    x = jax.random.normal(k_x, (BATCH, BIGNET_DIM), jnp.float32)
    params = init_params(k_p)

    fwd = jax.jit(qlora_bignet_forward)
    y = fwd(x, *params)
    jax.block_until_ready(y)

    y_ref = jax.jit(reference_forward)(x, *params)
    jax.block_until_ready(y_ref)

    assert y.shape == (BATCH, BIGNET_DIM) and y.dtype == jnp.float32
    assert bool(jnp.all(jnp.isfinite(y)))
    max_err = float(jnp.max(jnp.abs(y - y_ref)))
    assert max_err < 2e-2, f"kernel/reference mismatch: max abs err {max_err}"

    print("KERNEL_OK")
</pallas_src>

<mosaic_0001>
module attributes {stable_mosaic.version = 11 : i64} {
  func.func @qlora_bignet_kernel(%arg0: i32, %arg1: memref<16x128xf32, #tpu.memory_space<vmem>>, %arg2: memref<3x128x160xbf16, #tpu.memory_space<vmem>>, %arg3: memref<3x1x128xf32, #tpu.memory_space<vmem>>, %arg4: memref<3x32x128xbf16, #tpu.memory_space<vmem>>, %arg5: memref<5x1x128xf32, #tpu.memory_space<vmem>>, %arg6: memref<5x1x128xf32, #tpu.memory_space<vmem>>, %arg7: memref<16x128xf32, #tpu.memory_space<vmem>>, %arg8: memref<16x128xf32, #tpu.memory_space<vmem>>) attributes {dimension_semantics = [#tpu.dimension_semantics<arbitrary>], iteration_bounds = array<i64: 6>, scalar_prefetch = 0 : i64, scratch_operands = 1 : i64, tpu.core_type = #tpu.core_type<tc>, window_params = [{pipeline_mode = #tpu.pipeline_mode<synchronous>, transform_indices = @transform_0, window_bounds = array<i64: 16, 128>}, {transform_indices = @transform_1, window_bounds = array<i64: 3, 128, 160>}, {transform_indices = @transform_2, window_bounds = array<i64: 3, 1, 128>}, {transform_indices = @transform_3, window_bounds = array<i64: 3, 32, 128>}, {pipeline_mode = #tpu.pipeline_mode<synchronous>, transform_indices = @transform_4, window_bounds = array<i64: 5, 1, 128>}, {pipeline_mode = #tpu.pipeline_mode<synchronous>, transform_indices = @transform_5, window_bounds = array<i64: 5, 1, 128>}, {pipeline_mode = #tpu.pipeline_mode<synchronous>, transform_indices = @transform_6, window_bounds = array<i64: 16, 128>}]} {
    %c0_i32 = arith.constant 0 : i32
    %0 = arith.cmpi eq, %arg0, %c0_i32 : i32
    %1 = arith.extui %0 : i1 to i32
    %c0_i32_0 = arith.constant 0 : i32
    %2 = arith.cmpi ne, %1, %c0_i32_0 : i32
    scf.if %2 {
      %c0_37 = arith.constant 0 : index
      %c0_38 = arith.constant 0 : index
      %60 = vector.load %arg1[%c0_37, %c0_38] : memref<16x128xf32, #tpu.memory_space<vmem>>, vector<16x128xf32>
      %c0_39 = arith.constant 0 : index
      %c0_40 = arith.constant 0 : index
      %61 = vector.load %arg8[%c0_39, %c0_40] : memref<16x128xf32, #tpu.memory_space<vmem>>, vector<16x128xf32>
      tpu.vector_store %arg8[%c0_39, %c0_40], %60 {strides = array<i32>} : memref<16x128xf32, #tpu.memory_space<vmem>>, vector<16x128xf32>,
    } else {
    }
    %c0 = arith.constant 0 : index
    %c0_1 = arith.constant 0 : index
    %3 = vector.load %arg8[%c0, %c0_1] : memref<16x128xf32, #tpu.memory_space<vmem>>, vector<16x128xf32>
    %4 = arith.truncf %3 : vector<16x128xf32> to vector<16x128xbf16>
    %c0_2 = arith.constant 0 : index
    %c0_3 = arith.constant 0 : index
    %c0_4 = arith.constant 0 : index
    %5 = vector.load %arg2[%c0_2, %c0_3, %c0_4] : memref<3x128x160xbf16, #tpu.memory_space<vmem>>, vector<1x128x160xbf16>
    %6 = vector.shape_cast %5 : vector<1x128x160xbf16> to vector<128x160xbf16>
    %cst = arith.constant dense<0.000000e+00> : vector<16x160xf32>
    %7 = tpu.matmul %4, %6, %cst {dimension_numbers = #tpu.dot_dimension_numbers<[1], [0], [0], [1], [0, 0, 1, 1], [], []>} : vector<16x128xbf16>, vector<128x160xbf16>, vector<16x160xf32> -> vector<16x160xf32>
    %8 = vector.extract_strided_slice %7 {offsets = [0, 0], sizes = [16, 128], strides = [1, 1]} : vector<16x160xf32> to vector<16x128xf32>
    %9 = vector.extract_strided_slice %7 {offsets = [0, 128], sizes = [16, 32], strides = [1, 1]} : vector<16x160xf32> to vector<16x32xf32>
    %10 = arith.truncf %9 : vector<16x32xf32> to vector<16x32xbf16>
    %c0_5 = arith.constant 0 : index
    %c0_6 = arith.constant 0 : index
    %c0_7 = arith.constant 0 : index
    %11 = vector.load %arg4[%c0_5, %c0_6, %c0_7] : memref<3x32x128xbf16, #tpu.memory_space<vmem>>, vector<1x32x128xbf16>
    %12 = vector.shape_cast %11 : vector<1x32x128xbf16> to vector<32x128xbf16>
    %cst_8 = arith.constant dense<0.000000e+00> : vector<16x128xf32>
    %13 = tpu.matmul %10, %12, %cst_8 {dimension_numbers = #tpu.dot_dimension_numbers<[1], [0], [0], [1], [0, 0, 1, 1], [], []>} : vector<16x32xbf16>, vector<32x128xbf16>, vector<16x128xf32> -> vector<16x128xf32>
    %14 = arith.addf %8, %13 : vector<16x128xf32>
    %c0_9 = arith.constant 0 : index
    %c0_10 = arith.constant 0 : index
    %c0_11 = arith.constant 0 : index
    %15 = vector.load %arg3[%c0_9, %c0_10, %c0_11] : memref<3x1x128xf32, #tpu.memory_space<vmem>>, vector<1x1x128xf32>
    %16 = vector.shape_cast %15 : vector<1x1x128xf32> to vector<1x128xf32>
    %17 = vector.broadcast %16 : vector<1x128xf32> to vector<16x128xf32>
    %18 = arith.addf %14, %17 : vector<16x128xf32>
    %cst_12 = arith.constant 0.000000e+00 : f32
    %19 = vector.broadcast %cst_12 : f32 to vector<16x128xf32>
    %20 = arith.maximumf %18, %19 : vector<16x128xf32>
    %21 = arith.truncf %20 : vector<16x128xf32> to vector<16x128xbf16>
    %c1 = arith.constant 1 : index
    %c0_13 = arith.constant 0 : index
    %c0_14 = arith.constant 0 : index
    %22 = vector.load %arg2[%c1, %c0_13, %c0_14] : memref<3x128x160xbf16, #tpu.memory_space<vmem>>, vector<1x128x160xbf16>
    %23 = vector.shape_cast %22 : vector<1x128x160xbf16> to vector<128x160xbf16>
    %cst_15 = arith.constant dense<0.000000e+00> : vector<16x160xf32>
    %24 = tpu.matmul %21, %23, %cst_15 {dimension_numbers = #tpu.dot_dimension_numbers<[1], [0], [0], [1], [0, 0, 1, 1], [], []>} : vector<16x128xbf16>, vector<128x160xbf16>, vector<16x160xf32> -> vector<16x160xf32>
    %25 = vector.extract_strided_slice %24 {offsets = [0, 0], sizes = [16, 128], strides = [1, 1]} : vector<16x160xf32> to vector<16x128xf32>
    %26 = vector.extract_strided_slice %24 {offsets = [0, 128], sizes = [16, 32], strides = [1, 1]} : vector<16x160xf32> to vector<16x32xf32>
    %27 = arith.truncf %26 : vector<16x32xf32> to vector<16x32xbf16>
    %c1_16 = arith.constant 1 : index
    %c0_17 = arith.constant 0 : index
    %c0_18 = arith.constant 0 : index
    %28 = vector.load %arg4[%c1_16, %c0_17, %c0_18] : memref<3x32x128xbf16, #tpu.memory_space<vmem>>, vector<1x32x128xbf16>
    %29 = vector.shape_cast %28 : vector<1x32x128xbf16> to vector<32x128xbf16>
    %cst_19 = arith.constant dense<0.000000e+00> : vector<16x128xf32>
    %30 = tpu.matmul %27, %29, %cst_19 {dimension_numbers = #tpu.dot_dimension_numbers<[1], [0], [0], [1], [0, 0, 1, 1], [], []>} : vector<16x32xbf16>, vector<32x128xbf16>, vector<16x128xf32> -> vector<16x128xf32>
    %31 = arith.addf %25, %30 : vector<16x128xf32>
    %c1_20 = arith.constant 1 : index
    %c0_21 = arith.constant 0 : index
    %c0_22 = arith.constant 0 : index
    %32 = vector.load %arg3[%c1_20, %c0_21, %c0_22] : memref<3x1x128xf32, #tpu.memory_space<vmem>>, vector<1x1x128xf32>
    %33 = vector.shape_cast %32 : vector<1x1x128xf32> to vector<1x128xf32>
    %34 = vector.broadcast %33 : vector<1x128xf32> to vector<16x128xf32>
    %35 = arith.addf %31, %34 : vector<16x128xf32>
    %cst_23 = arith.constant 0.000000e+00 : f32
    %36 = vector.broadcast %cst_23 : f32 to vector<16x128xf32>
    %37 = arith.maximumf %35, %36 : vector<16x128xf32>
    %38 = arith.truncf %37 : vector<16x128xf32> to vector<16x128xbf16>
    %c2 = arith.constant 2 : index
    %c0_24 = arith.constant 0 : index
    %c0_25 = arith.constant 0 : index
    %39 = vector.load %arg2[%c2, %c0_24, %c0_25] : memref<3x128x160xbf16, #tpu.memory_space<vmem>>, vector<1x128x160xbf16>
    %40 = vector.shape_cast %39 : vector<1x128x160xbf16> to vector<128x160xbf16>
    %cst_26 = arith.constant dense<0.000000e+00> : vector<16x160xf32>
    %41 = tpu.matmul %38, %40, %cst_26 {dimension_numbers = #tpu.dot_dimension_numbers<[1], [0], [0], [1], [0, 0, 1, 1], [], []>} : vector<16x128xbf16>, vector<128x160xbf16>, vector<16x160xf32> -> vector<16x160xf32>
    %42 = vector.extract_strided_slice %41 {offsets = [0, 0], sizes = [16, 128], strides = [1, 1]} : vector<16x160xf32> to vector<16x128xf32>
    %43 = vector.extract_strided_slice %41 {offsets = [0, 128], sizes = [16, 32], strides = [1, 1]} : vector<16x160xf32> to vector<16x32xf32>
    %44 = arith.truncf %43 : vector<16x32xf32> to vector<16x32xbf16>
    %c2_27 = arith.constant 2 : index
    %c0_28 = arith.constant 0 : index
    %c0_29 = arith.constant 0 : index
    %45 = vector.load %arg4[%c2_27, %c0_28, %c0_29] : memref<3x32x128xbf16, #tpu.memory_space<vmem>>, vector<1x32x128xbf16>
    %46 = vector.shape_cast %45 : vector<1x32x128xbf16> to vector<32x128xbf16>
    %cst_30 = arith.constant dense<0.000000e+00> : vector<16x128xf32>
    %47 = tpu.matmul %44, %46, %cst_30 {dimension_numbers = #tpu.dot_dimension_numbers<[1], [0], [0], [1], [0, 0, 1, 1], [], []>} : vector<16x32xbf16>, vector<32x128xbf16>, vector<16x128xf32> -> vector<16x128xf32>
    %48 = arith.addf %42, %47 : vector<16x128xf32>
    %c2_31 = arith.constant 2 : index
    %c0_32 = arith.constant 0 : index
    %c0_33 = arith.constant 0 : index
    %49 = vector.load %arg3[%c2_31, %c0_32, %c0_33] : memref<3x1x128xf32, #tpu.memory_space<vmem>>, vector<1x1x128xf32>
    %50 = vector.shape_cast %49 : vector<1x1x128xf32> to vector<1x128xf32>
    %51 = vector.broadcast %50 : vector<1x128xf32> to vector<16x128xf32>
    %52 = arith.addf %48, %51 : vector<16x128xf32>
    %53 = arith.addf %52, %3 : vector<16x128xf32>
    %c5_i32 = arith.constant 5 : i32
    %54 = arith.cmpi slt, %arg0, %c5_i32 : i32
    %55 = arith.extui %54 : i1 to i32
    %c0_i32_34 = arith.constant 0 : i32
    %56 = arith.cmpi ne, %55, %c0_i32_34 : i32
    scf.if %56 {
      %cst_37 = arith.constant dense<0.000000e+00> : vector<16xf32>
      %60 = vector.multi_reduction <add>, %53, %cst_37 [1] : vector<16x128xf32> to vector<16xf32>
      %61 = vector.shape_cast %60 : vector<16xf32> to vector<16x1xf32>
      %cst_38 = arith.constant 1.280000e+02 : f32
      %62 = vector.broadcast %cst_38 : f32 to vector<16x1xf32>
      %63 = arith.divf %61, %62 : vector<16x1xf32>
      %64 = vector.broadcast %63 : vector<16x1xf32> to vector<16x128xf32>
      %65 = arith.subf %53, %64 : vector<16x128xf32>
      %66 = arith.mulf %65, %65 : vector<16x128xf32>
      %cst_39 = arith.constant dense<0.000000e+00> : vector<16xf32>
      %67 = vector.multi_reduction <add>, %66, %cst_39 [1] : vector<16x128xf32> to vector<16xf32>
      %68 = vector.shape_cast %67 : vector<16xf32> to vector<16x1xf32>
      %cst_40 = arith.constant 1.280000e+02 : f32
      %69 = vector.broadcast %cst_40 : f32 to vector<16x1xf32>
      %70 = arith.divf %68, %69 : vector<16x1xf32>
      %cst_41 = arith.constant 9.99999974E-6 : f32
      %71 = vector.broadcast %cst_41 : f32 to vector<16x1xf32>
      %72 = arith.addf %70, %71 : vector<16x1xf32>
      %73 = math.rsqrt %72 : vector<16x1xf32>
      %74 = vector.broadcast %73 : vector<16x1xf32> to vector<16x128xf32>
      %75 = arith.mulf %65, %74 : vector<16x128xf32>
      %76 = arith.index_cast %arg0 : i32 to index
      %c0_42 = arith.constant 0 : index
      %c0_43 = arith.constant 0 : index
      %77 = vector.load %arg5[%76, %c0_42, %c0_43] : memref<5x1x128xf32, #tpu.memory_space<vmem>>, vector<1x1x128xf32>
      %78 = vector.shape_cast %77 : vector<1x1x128xf32> to vector<1x128xf32>
      %79 = vector.broadcast %78 : vector<1x128xf32> to vector<16x128xf32>
      %80 = arith.mulf %75, %79 : vector<16x128xf32>
      %81 = arith.index_cast %arg0 : i32 to index
      %c0_44 = arith.constant 0 : index
      %c0_45 = arith.constant 0 : index
      %82 = vector.load %arg6[%81, %c0_44, %c0_45] : memref<5x1x128xf32, #tpu.memory_space<vmem>>, vector<1x1x128xf32>
      %83 = vector.shape_cast %82 : vector<1x1x128xf32> to vector<1x128xf32>
      %84 = vector.broadcast %83 : vector<1x128xf32> to vector<16x128xf32>
      %85 = arith.addf %80, %84 : vector<16x128xf32>
      %c0_46 = arith.constant 0 : index
      %c0_47 = arith.constant 0 : index
      %86 = vector.load %arg8[%c0_46, %c0_47] : memref<16x128xf32, #tpu.memory_space<vmem>>, vector<16x128xf32>
      tpu.vector_store %arg8[%c0_46, %c0_47], %85 {strides = array<i32>} : memref<16x128xf32, #tpu.memory_space<vmem>>, vector<16x128xf32>,
    } else {
    }
    %c5_i32_35 = arith.constant 5 : i32
    %57 = arith.cmpi eq, %arg0, %c5_i32_35 : i32
    %58 = arith.extui %57 : i1 to i32
    %c0_i32_36 = arith.constant 0 : i32
    %59 = arith.cmpi ne, %58, %c0_i32_36 : i32
    scf.if %59 {
      %c0_37 = arith.constant 0 : index
      %c0_38 = arith.constant 0 : index
      %60 = vector.load %arg7[%c0_37, %c0_38] : memref<16x128xf32, #tpu.memory_space<vmem>>, vector<16x128xf32>
      tpu.vector_store %arg7[%c0_37, %c0_38], %53 {strides = array<i32>} : memref<16x128xf32, #tpu.memory_space<vmem>>, vector<16x128xf32>,
    } else {
    }
    return
  }
  func.func @transform_0(%arg0: i32) -> (i32, i32) {
    %c0_i32 = arith.constant 0 : i32
    %c0_i32_0 = arith.constant 0 : i32
    %c0_i32_1 = arith.constant 0 : i32
    return %c0_i32, %c0_i32_0 : i32, i32
  }
  func.func @transform_1(%arg0: i32) -> (i32, i32, i32) {
    %c0_i32 = arith.constant 0 : i32
    %c0_i32_0 = arith.constant 0 : i32
    %c0_i32_1 = arith.constant 0 : i32
    return %arg0, %c0_i32, %c0_i32_0 : i32, i32, i32
  }
  func.func @transform_2(%arg0: i32) -> (i32, i32, i32) {
    %c0_i32 = arith.constant 0 : i32
    %c0_i32_0 = arith.constant 0 : i32
    %c0_i32_1 = arith.constant 0 : i32
    return %arg0, %c0_i32, %c0_i32_0 : i32, i32, i32
  }
  func.func @transform_3(%arg0: i32) -> (i32, i32, i32) {
    %c0_i32 = arith.constant 0 : i32
    %c0_i32_0 = arith.constant 0 : i32
    %c0_i32_1 = arith.constant 0 : i32
    return %arg0, %c0_i32, %c0_i32_0 : i32, i32, i32
  }
  func.func @transform_4(%arg0: i32) -> (i32, i32, i32) {
    %c0_i32 = arith.constant 0 : i32
    %c0_i32_0 = arith.constant 0 : i32
    %c0_i32_1 = arith.constant 0 : i32
    %c0_i32_2 = arith.constant 0 : i32
    return %c0_i32, %c0_i32_0, %c0_i32_1 : i32, i32, i32
  }
  func.func @transform_5(%arg0: i32) -> (i32, i32, i32) {
    %c0_i32 = arith.constant 0 : i32
    %c0_i32_0 = arith.constant 0 : i32
    %c0_i32_1 = arith.constant 0 : i32
    %c0_i32_2 = arith.constant 0 : i32
    return %c0_i32, %c0_i32_0, %c0_i32_1 : i32, i32, i32
  }
  func.func @transform_6(%arg0: i32) -> (i32, i32) {
    %c0_i32 = arith.constant 0 : i32
    %c0_i32_0 = arith.constant 0 : i32
    %c0_i32_1 = arith.constant 0 : i32
    return %c0_i32, %c0_i32_0 : i32, i32
  }
}

</mosaic_0001>

<llo_original>
// kernel: qlora_bignet_forward.1
$region0: #{qlora_bignet_forward.1}
  #allocation0 [shape = 'u32[]', space=smem, size = 0x4, offset = 0x4, fixed_abs, tag = 'smem constant byte address 0x4 - core index']
  #allocation1 [shape = 'u32[72,128]{1,0:T(1,128)}', space=vmem, size = 0x9000, scoped, tag = 'internal scratch']
  #allocation2 [shape = 'f32[16,128]{1,0:T(8,128)}', space=vmem, size = 0x2000, scoped, tag = 'scratch operand']
  %s0 = inlined_call_operand.vmem [shape: f32[16,128], index: 0, kind: input, shape index: {}]
  %s1 = inlined_call_operand.vmem [shape: bf16[18,128,160], index: 1, kind: input, shape index: {}]
  %s2 = inlined_call_operand.vmem [shape: f32[18,1,128], index: 2, kind: input, shape index: {}]
  %s3 = inlined_call_operand.vmem [shape: bf16[18,32,128], index: 3, kind: input, shape index: {}]
  %s4 = inlined_call_operand.vmem [shape: f32[5,1,128], index: 4, kind: input, shape index: {}]
  %s5 = inlined_call_operand.vmem [shape: f32[5,1,128], index: 5, kind: input, shape index: {}]
  %s6 = inlined_call_operand.hbm [shape: f32[16,128], index: 6, kind: output, shape index: {}]
  %s7 = sld [smem:[#allocation0]]
  $region69: #{qlora_bignet_forward.1} parent=0
    _
  %s9 = ssub.s32 1, %s7
  %s10 = scalar_select 0, %s9, %s7
  $region1: #{qlora_bignet_forward.1} parent=0
    #allocation3 [shape = 'u8[8192]{0}', space=vmem, size = 0x2000, scoped, tag = 'output window, operand 0, single buffered']
    #allocation4 [shape = 's32[2]{0}', space=sflag, size = 0x8, scoped, tag = 'scoped memory for qlora_bignet_forward.1']
    %11 = vsyncpa [#allocation4], 0
    loop: start=0, step=1, limit=8
    $region2: #{qlora_bignet_forward.1} parent=1 // loop_pre_header
      _
    $region3: #{qlora_bignet_forward.1} parent=1 // loop_header
      %s13 = sphi 0, %s17
      %p14 = scmp.ge.s32.totalorder %s13, 8
      %s21 = sphi 0, %s21
      %s23 = sphi 0, %s21
      %s24 = sphi 0, %s23
      %s38 = sphi 0, %s24
      %s44 = sphi 0, %s46
      %s47 = sphi 0, %s44
      %s48 = sphi 0, %s47
      %s64 = sphi 0, %s48
      %s70 = sphi 0, %s72
      %s73 = sphi 0, %s70
      %s74 = sphi 0, %s73
      %s90 = sphi 0, %s74
      %s96 = sphi 0, %s98
      %s99 = sphi 0, %s96
      %s100 = sphi 0, %s99
      %s116 = sphi 0, %s100
      %s120 = sphi 0, %s120
      %s122 = sphi 0, %s120
      %s123 = sphi 0, %s122
      %s137 = sphi 0, %s123
      %s141 = sphi 0, %s141
      %s143 = sphi 0, %s141
      %s144 = sphi 0, %s143
      %s158 = sphi 0, %s144
      %s162 = sphi 0, %s162
      %s164 = sphi 0, %s162
      %s165 = sphi 0, %s164
      %s179 = sphi 0, %s165
    $region4: #{qlora_bignet_forward.1} parent=1 // loop_header_branch
      %16 = sbr.rel (%p14) target = $region8
    $region5: #{qlora_bignet_forward.1} parent=1 // loop_body
      %s18 = ssub.s32 %s13, 1
      %s19 = ssub.s32 %s13, 2
      %s20 = sadd.s32 %s13, 1
      %s22 = sadd.s32 %s21, 1
      %p25 = scmp.eq.s32.totalorder %s13, 5
      %p26 = scmp.ne.s32.totalorder %s21, %s23
      %p27 = scmp.eq.s32.totalorder %s13, 0
      %p28 = por %p26, %p27
      %p29 = scmp.ne.s32.totalorder %s21, %s23
      %p30 = scmp.eq.s32.totalorder %s18, 5
      %p31 = por %p29, %p30
      %p32 = scmp.ne.s32.totalorder %s23, %s24
      %p33 = scmp.eq.s32.totalorder %s18, 0
      %p34 = por %p32, %p33
      %p35 = scmp.ne.s32.totalorder %s23, %s24
      %p36 = scmp.eq.s32.totalorder %s19, 5
      %p37 = por %p35, %p36
      %p39 = scmp.ne.s32.totalorder %s24, %s38
      %p40 = scmp.eq.s32.totalorder %s19, 0
      %p41 = por %p39, %p40
      %s42 = ssub.s32 %s13, %s20
      %p43 = scmp.eq.s32.totalorder %s42, 0
      %s45 = sadd.s32 %s44, 1
      %s46 = scalar_select %p43, %s44, %s45
      %p49 = pneg %p43
      %p50 = scmp.eq.s32.totalorder %s13, 5
      %p51 = por %p49, %p50
      %p52 = scmp.ne.s32.totalorder %s44, %s47
      %p53 = scmp.eq.s32.totalorder %s13, 0
      %p54 = por %p52, %p53
      %p55 = scmp.ne.s32.totalorder %s44, %s47
      %p56 = scmp.eq.s32.totalorder %s18, 5
      %p57 = por %p55, %p56
      %p58 = scmp.ne.s32.totalorder %s47, %s48
      %p59 = scmp.eq.s32.totalorder %s18, 0
      %p60 = por %p58, %p59
      %p61 = scmp.ne.s32.totalorder %s47, %s48
      %p62 = scmp.eq.s32.totalorder %s19, 5
      %p63 = por %p61, %p62
      %p65 = scmp.ne.s32.totalorder %s48, %s64
      %p66 = scmp.eq.s32.totalorder %s19, 0
      %p67 = por %p65, %p66
      %s68 = ssub.s32 %s13, %s20
      %p69 = scmp.eq.s32.totalorder %s68, 0
      %s71 = sadd.s32 %s70, 1
      %s72 = scalar_select %p69, %s70, %s71
      %p75 = pneg %p69
      %p76 = scmp.eq.s32.totalorder %s13, 5
      %p77 = por %p75, %p76
      %p78 = scmp.ne.s32.totalorder %s70, %s73
      %p79 = scmp.eq.s32.totalorder %s13, 0
      %p80 = por %p78, %p79
      %p81 = scmp.ne.s32.totalorder %s70, %s73
      %p82 = scmp.eq.s32.totalorder %s18, 5
      %p83 = por %p81, %p82
      %p84 = scmp.ne.s32.totalorder %s73, %s74
      %p85 = scmp.eq.s32.totalorder %s18, 0
      %p86 = por %p84, %p85
      %p87 = scmp.ne.s32.totalorder %s73, %s74
      %p88 = scmp.eq.s32.totalorder %s19, 5
      %p89 = por %p87, %p88
      %p91 = scmp.ne.s32.totalorder %s74, %s90
      %p92 = scmp.eq.s32.totalorder %s19, 0
      %p93 = por %p91, %p92
      %s94 = ssub.s32 %s13, %s20
      %p95 = scmp.eq.s32.totalorder %s94, 0
      %s97 = sadd.s32 %s96, 1
      %s98 = scalar_select %p95, %s96, %s97
      %p101 = pneg %p95
      %p102 = scmp.eq.s32.totalorder %s13, 5
      %p103 = por %p101, %p102
      %p104 = scmp.ne.s32.totalorder %s96, %s99
      %p105 = scmp.eq.s32.totalorder %s13, 0
      %p106 = por %p104, %p105
      %p107 = scmp.ne.s32.totalorder %s96, %s99
      %p108 = scmp.eq.s32.totalorder %s18, 5
      %p109 = por %p107, %p108
      %p110 = scmp.ne.s32.totalorder %s99, %s100
      %p111 = scmp.eq.s32.totalorder %s18, 0
      %p112 = por %p110, %p111
      %p113 = scmp.ne.s32.totalorder %s99, %s100
      %p114 = scmp.eq.s32.totalorder %s19, 5
      %p115 = por %p113, %p114
      %p117 = scmp.ne.s32.totalorder %s100, %s116
      %p118 = scmp.eq.s32.totalorder %s19, 0
      %p119 = por %p117, %p118
      %s121 = sadd.s32 %s120, 1
      %p124 = scmp.eq.s32.totalorder %s13, 5
      %p125 = scmp.ne.s32.totalorder %s120, %s122
      %p126 = scmp.eq.s32.totalorder %s13, 0
      %p127 = por %p125, %p126
      %p128 = scmp.ne.s32.totalorder %s120, %s122
      %p129 = scmp.eq.s32.totalorder %s18, 5
      %p130 = por %p128, %p129
      %p131 = scmp.ne.s32.totalorder %s122, %s123
      %p132 = scmp.eq.s32.totalorder %s18, 0
      %p133 = por %p131, %p132
      %p134 = scmp.ne.s32.totalorder %s122, %s123
      %p135 = scmp.eq.s32.totalorder %s19, 5
      %p136 = por %p134, %p135
      %p138 = scmp.ne.s32.totalorder %s123, %s137
      %p139 = scmp.eq.s32.totalorder %s19, 0
      %p140 = por %p138, %p139
      %s142 = sadd.s32 %s141, 1
      %p145 = scmp.eq.s32.totalorder %s13, 5
      %p146 = scmp.ne.s32.totalorder %s141, %s143
      %p147 = scmp.eq.s32.totalorder %s13, 0
      %p148 = por %p146, %p147
      %p149 = scmp.ne.s32.totalorder %s141, %s143
      %p150 = scmp.eq.s32.totalorder %s18, 5
      %p151 = por %p149, %p150
      %p152 = scmp.ne.s32.totalorder %s143, %s144
      %p153 = scmp.eq.s32.totalorder %s18, 0
      %p154 = por %p152, %p153
      %p155 = scmp.ne.s32.totalorder %s143, %s144
      %p156 = scmp.eq.s32.totalorder %s19, 5
      %p157 = por %p155, %p156
      %p159 = scmp.ne.s32.totalorder %s144, %s158
      %p160 = scmp.eq.s32.totalorder %s19, 0
      %p161 = por %p159, %p160
      %s163 = sadd.s32 %s162, 1
      %p166 = scmp.eq.s32.totalorder %s13, 5
      %p167 = scmp.ne.s32.totalorder %s162, %s164
      %p168 = scmp.eq.s32.totalorder %s13, 0
      %p169 = por %p167, %p168
      %p170 = scmp.ne.s32.totalorder %s162, %s164
      %p171 = scmp.eq.s32.totalorder %s18, 5
      %p172 = por %p170, %p171
      %p173 = scmp.ne.s32.totalorder %s164, %s165
      %p174 = scmp.eq.s32.totalorder %s18, 0
      %p175 = por %p173, %p174
      %p176 = scmp.ne.s32.totalorder %s164, %s165
      %p177 = scmp.eq.s32.totalorder %s19, 5
      %p178 = por %p176, %p177
      %p180 = scmp.ne.s32.totalorder %s165, %s179
      %p181 = scmp.eq.s32.totalorder %s19, 0
      %p182 = por %p180, %p181
      %p183 = scmp.le.s32.totalorder 1, %s13
      %p184 = scmp.lt.s32.totalorder %s13, 7
      %p185 = pnand %p183, %p184
      %p186 = pneg %p185
      // Predicated region
      $region9: #{qlora_bignet_forward.1} parent=5 // pred_check
        _
      $region10: #{qlora_bignet_forward.1} parent=5 // pred_check_branch
        %188 = sbr.rel (%p185) target = $region12
      $region11: #{qlora_bignet_forward.1} parent=5 // pred_region
        %s189 = ssub.s32 %s13, 1
        // Predicated region
        $region13: #{qlora_bignet_forward.1} parent=11 // pred_check
          %p190 = pneg %p34
        $region14: #{qlora_bignet_forward.1} parent=11 // pred_check_branch
          %192 = sbr.rel (%p190) target = $region16
        $region15: #{qlora_bignet_forward.1} parent=11 // pred_region
          _
        $region16: #{qlora_bignet_forward.1} parent=11 // pred_fallthru
          _
        // Predicated region
        $region17: #{qlora_bignet_forward.1} parent=11 // pred_check
          %p193 = pneg %p133
        $region18: #{qlora_bignet_forward.1} parent=11 // pred_check_branch
          %195 = sbr.rel (%p193) target = $region20
        $region19: #{qlora_bignet_forward.1} parent=11 // pred_region
          _
        $region20: #{qlora_bignet_forward.1} parent=11 // pred_fallthru
          _
        // Predicated region
        $region21: #{qlora_bignet_forward.1} parent=11 // pred_check
          %p196 = pneg %p154
        $region22: #{qlora_bignet_forward.1} parent=11 // pred_check_branch
          %198 = sbr.rel (%p196) target = $region24
        $region23: #{qlora_bignet_forward.1} parent=11 // pred_region
          _
        $region24: #{qlora_bignet_forward.1} parent=11 // pred_fallthru
          _
      $region12: #{qlora_bignet_forward.1} parent=5 // pred_fallthru
        _
      %p199 = scmp.lt.s32.totalorder %s13, 6
      // Predicated region
      $region25: #{qlora_bignet_forward.1} parent=5 // pred_check
        %p200 = pneg %p199
      $region26: #{qlora_bignet_forward.1} parent=5 // pred_check_branch
        %202 = sbr.rel (%p200) target = $region28
      $region27: #{qlora_bignet_forward.1} parent=5 // pred_region
        // Predicated region
        $region29: #{qlora_bignet_forward.1} parent=27 // pred_check
          %p203 = pneg %p54
        $region30: #{qlora_bignet_forward.1} parent=27 // pred_check_branch
          %205 = sbr.rel (%p203) target = $region32
        $region31: #{qlora_bignet_forward.1} parent=27 // pred_region
          %s206 = smul.u32 3, %s13
          %p207 = scmp.lt.s32.totalorder %s206, 17
          %s208 = scalar_select %p207, %s206, 17
          %s209 = smul.addr %s208, 32
          %s210 = smul.addr %s209, 4
          %s211 = scalar_lea.vmem %s1, %s210
          %s212 = smul.u32 3, %s13
        $region32: #{qlora_bignet_forward.1} parent=27 // pred_fallthru
          _
        // Predicated region
        $region33: #{qlora_bignet_forward.1} parent=27 // pred_check
          %p213 = pneg %p80
        $region34: #{qlora_bignet_forward.1} parent=27 // pred_check_branch
          %215 = sbr.rel (%p213) target = $region36
        $region35: #{qlora_bignet_forward.1} parent=27 // pred_region
          %s216 = smul.u32 3, %s13
          %p217 = scmp.lt.s32.totalorder %s216, 17
          %s218 = scalar_select %p217, %s216, 17
          %s219 = scalar_lea.vmem %s2, %s218
          %s220 = smul.u32 3, %s13
        $region36: #{qlora_bignet_forward.1} parent=27 // pred_fallthru
          _
        // Predicated region
        $region37: #{qlora_bignet_forward.1} parent=27 // pred_check
          %p221 = pneg %p106
        $region38: #{qlora_bignet_forward.1} parent=27 // pred_check_branch
          %223 = sbr.rel (%p221) target = $region40
        $region39: #{qlora_bignet_forward.1} parent=27 // pred_region
          %s224 = smul.u32 3, %s13
          %p225 = scmp.lt.s32.totalorder %s224, 17
          %s226 = scalar_select %p225, %s224, 17
          %s227 = smul.addr %s226, 4
          %s228 = smul.addr %s227, 4
          %s229 = scalar_lea.vmem %s3, %s228
          %s230 = smul.u32 3, %s13
        $region40: #{qlora_bignet_forward.1} parent=27 // pred_fallthru
          _
      $region28: #{qlora_bignet_forward.1} parent=5 // pred_fallthru
        _
      %p231 = scmp.le.s32.totalorder 1, %s13
      %p232 = scmp.lt.s32.totalorder %s13, 7
      %p233 = pnand %p231, %p232
      %p234 = pneg %p233
      // Predicated region
      $region41: #{qlora_bignet_forward.1} parent=5 // pred_check
        _
      $region42: #{qlora_bignet_forward.1} parent=5 // pred_check_branch
        %236 = sbr.rel (%p233) target = $region44
      $region43: #{qlora_bignet_forward.1} parent=5 // pred_region
        %s237 = ssub.s32 %s13, 1
        %p238 = pneg %p34
        %p239 = pneg %p31
        %s240 = smul.u32 3, %s18
        %p241 = scmp.lt.s32.totalorder %s240, 17
        %s242 = scalar_select %p241, %s240, 17
        %s243 = smul.addr %s242, 32
        %s244 = smul.addr %s243, 4
        %s245 = scalar_lea.vmem %s1, %s244
        %p246 = pneg %p60
        %p247 = pneg %p57
        %s248 = smul.u32 3, %s18
        %p249 = scmp.lt.s32.totalorder %s248, 17
        %s250 = scalar_select %p249, %s248, 17
        %s251 = scalar_lea.vmem %s2, %s250
        %p252 = pneg %p86
        %p253 = pneg %p83
        %s254 = smul.u32 3, %s18
        %p255 = scmp.lt.s32.totalorder %s254, 17
        %s256 = scalar_select %p255, %s254, 17
        %s257 = smul.addr %s256, 4
        %s258 = smul.addr %s257, 4
        %s259 = scalar_lea.vmem %s3, %s258
        %p260 = pneg %p112
        %p261 = pneg %p109
        %p262 = pneg %p133
        %p263 = pneg %p130
        %p264 = pneg %p154
        %p265 = pneg %p151
        %p266 = pneg %p175
        %p267 = pneg %p172
        %s268 = smul.u32 3, %s18
        %p269 = scmp.lt.s32.totalorder %s268, 17
        %s270 = scalar_select %p269, %s268, 17
        %s271 = smul.addr %s270, 32
        %s272 = smul.addr %s271, 4
        %s273 = scalar_lea.vmem %s1, %s272
        %s274 = smul.u32 3, %s18
        %s275 = smul.u32 3, %s18
        %p276 = scmp.lt.s32.totalorder %s275, 17
        %s277 = scalar_select %p276, %s275, 17
        %s278 = scalar_lea.vmem %s2, %s277
        %s279 = smul.u32 3, %s18
        %s280 = smul.u32 3, %s18
        %p281 = scmp.lt.s32.totalorder %s280, 17
        %s282 = scalar_select %p281, %s280, 17
        %s283 = smul.addr %s282, 4
        %s284 = smul.addr %s283, 4
        %s285 = scalar_lea.vmem %s3, %s284
        %s286 = smul.u32 3, %s18
        %p288 = scmp.eq.s32.totalorder %s18, 0
        // Predicated region
        $region45: #{qlora_bignet_forward.1} parent=43 // pred_check
          %p289 = pneg %p288
        $region46: #{qlora_bignet_forward.1} parent=43 // pred_check_branch
          %291 = sbr.rel (%p289) target = $region48
        $region47: #{qlora_bignet_forward.1} parent=43 // pred_region
          %v292 = vld [vmem:[%s0] sm:$0xff]
          %v293 = vld [vmem:[%s0 + $0x8] sm:$0xff]
          %294 = vst [vmem:[#allocation2] sm:$0xff] %v292
          %295 = vst [vmem:[#allocation2 + $0x8] sm:$0xff] %v293
        $region48: #{qlora_bignet_forward.1} parent=43 // pred_fallthru
          _
        %v296 = vld [vmem:[#allocation2] sm:$0xff]
        %v297 = vld [vmem:[#allocation2 + $0x8] sm:$0xff]
        %v298 = vpack.c.bf16 %v297, %v296
        %v299 = vld [vmem:[%s273] sm:$0xff]
        %v300 = vld [vmem:[%s273 + $0x8] sm:$0xff]
        %v301 = vld [vmem:[%s273 + $0x10] sm:$0xff]
        %v302 = vld [vmem:[%s273 + $0x18] sm:$0xff]
        %v303 = vld [vmem:[%s273 + $0x20] sm:$0xff]
        %v304 = vld [vmem:[%s273 + $0x28] sm:$0xff]
        %v305 = vld [vmem:[%s273 + $0x30] sm:$0xff]
        %v306 = vld [vmem:[%s273 + $0x38] sm:$0xff]
        %v307 = vld [vmem:[%s273 + $0x40] sm:$0xff]
        %v308 = vld [vmem:[%s273 + $0x48] sm:$0xff]
        %v309 = vld [vmem:[%s273 + $0x50] sm:$0xff]
        %v310 = vld [vmem:[%s273 + $0x58] sm:$0xff]
        %v311 = vld [vmem:[%s273 + $0x60] sm:$0xff]
        %v312 = vld [vmem:[%s273 + $0x68] sm:$0xff]
        %v313 = vld [vmem:[%s273 + $0x70] sm:$0xff]
        %v314 = vld [vmem:[%s273 + $0x78] sm:$0xff]
        %v331 = vunpack.c.l.b16 %v299
        %v332 = vunpack.c.h.b16 %v299
        %v333 = vunpack.c.l.b16 %v300
        %v334 = vunpack.c.h.b16 %v300
        %v335 = vunpack.c.l.b16 %v301
        %v336 = vunpack.c.h.b16 %v301
        %v337 = vunpack.c.l.b16 %v302
        %v338 = vunpack.c.h.b16 %v302
        %v339 = vunpack.c.l.b16 %v303
        %v340 = vunpack.c.h.b16 %v303
        %v341 = vunpack.c.l.b16 %v304
        %v342 = vunpack.c.h.b16 %v304
        %v343 = vunpack.c.l.b16 %v305
        %v344 = vunpack.c.h.b16 %v305
        %v345 = vunpack.c.l.b16 %v306
        %v346 = vunpack.c.h.b16 %v306
        %v347 = vunpack.c.l.b16 %v307
        %v348 = vunpack.c.h.b16 %v307
        %v349 = vunpack.c.l.b16 %v308
        %v350 = vunpack.c.h.b16 %v308
        %v351 = vunpack.c.l.b16 %v309
        %v352 = vunpack.c.h.b16 %v309
        %v353 = vunpack.c.l.b16 %v310
        %v354 = vunpack.c.h.b16 %v310
        %v355 = vunpack.c.l.b16 %v311
        %v356 = vunpack.c.h.b16 %v311
        %v357 = vunpack.c.l.b16 %v312
        %v358 = vunpack.c.h.b16 %v312
        %v359 = vunpack.c.l.b16 %v313
        %v360 = vunpack.c.h.b16 %v313
        %v361 = vunpack.c.l.b16 %v314
        %v362 = vunpack.c.h.b16 %v314
        %v363 = vpack.c.b16 %v333, %v331
        %v364 = vpack.c.b16 %v334, %v332
        %v365 = vpack.c.b16 %v337, %v335
        %v366 = vpack.c.b16 %v338, %v336
        %v367 = vpack.c.b16 %v341, %v339
        %v368 = vpack.c.b16 %v342, %v340
        %v369 = vpack.c.b16 %v345, %v343
        %v370 = vpack.c.b16 %v346, %v344
        %v371 = vpack.c.b16 %v349, %v347
        %v372 = vpack.c.b16 %v350, %v348
        %v373 = vpack.c.b16 %v353, %v351
        %v374 = vpack.c.b16 %v354, %v352
        %v375 = vpack.c.b16 %v357, %v355
        %v376 = vpack.c.b16 %v358, %v356
        %v377 = vpack.c.b16 %v361, %v359
        %v378 = vpack.c.b16 %v362, %v360
        %395 = vmatpush.bf16.msra.mxu0 %v377
        %396 = vmatpush.bf16.msra.mxu0 %v375
        %397 = vmatpush.bf16.msra.mxu0 %v373
        %398 = vmatpush.bf16.msra.mxu0 %v371
        %399 = vmatpush.bf16.msra.mxu0 %v369
        %400 = vmatpush.bf16.msra.mxu0 %v367
        %401 = vmatpush.bf16.msra.mxu0 %v365
        %402 = vmatpush.bf16.msra.mxu0 %v363
        %403 = vmatmul.bf16.gmra.mxu0 %v298
        %v404 = vpop.f32.mrf.mxu0
        %v405 = vadd.f32 0.0, %v404
        %v406 = vpop.f32.mrf.mxu0
        %v407 = vadd.f32 0.0, %v406
        %408 = vdwg.mxu0
        %409 = vmatpush.bf16.msra.mxu0 %v378
        %410 = vmatpush.bf16.msra.mxu0 %v376
        %411 = vmatpush.bf16.msra.mxu0 %v374
        %412 = vmatpush.bf16.msra.mxu0 %v372
        %413 = vmatpush.bf16.msra.mxu0 %v370
        %414 = vmatpush.bf16.msra.mxu0 %v368
        %415 = vmatpush.bf16.msra.mxu0 %v366
        %416 = vmatpush.bf16.msra.mxu0 %v364
        %417 = vmatmul.bf16.gmra.mxu0 %v298
        %v418 = vpop.f32.mrf.mxu0
        %v419 = vadd.f32 0.0, %v418
        %v420 = vpop.f32.mrf.mxu0
        %v421 = vadd.f32 0.0, %v420
        %422 = vdwg.mxu0
        %v423 = vpack.c.bf16 %v421, %v419
        %v424 = vld [vmem:[%s285] sm:$0xf]
        %v425 = vld [vmem:[%s285 + $0x4] sm:$0xf]
        %v426 = vld [vmem:[%s285 + $0x8] sm:$0xf]
        %v427 = vld [vmem:[%s285 + $0xc] sm:$0xf]
        %v432 = vunpack.c.l.b16 %v424
        %v433 = vunpack.c.l.b16 %v425
        %v434 = vunpack.c.l.b16 %v426
        %v435 = vunpack.c.l.b16 %v427
        %v436 = vpack.c.b16 %v433, %v432
        %v437 = vpack.c.b16 %v435, %v434
        %vm440 = vcmask 261120
        %v442 = vsel %vm440, %v423, 0
        %444 = vmatpush.bf16.msra.mxu0 0
        %445 = vmatpush.bf16.msra.mxu0 0
        %446 = vmatpush.bf16.msra.mxu0 0
        %447 = vmatpush.bf16.msra.mxu0 0
        %448 = vmatpush.bf16.msra.mxu0 0
        %449 = vmatpush.bf16.msra.mxu0 0
        %450 = vmatpush.bf16.msra.mxu0 %v437
        %451 = vmatpush.bf16.msra.mxu0 %v436
        %452 = vmatmul.bf16.gmra.mxu0 %v442
        %v453 = vpop.f32.mrf.mxu0
        %v454 = vadd.f32 0.0, %v453
        %v455 = vpop.f32.mrf.mxu0
        %v456 = vadd.f32 0.0, %v455
        %457 = vdwg.mxu0
        %v458 = vadd.f32 %v405, %v454
        %v459 = vadd.f32 %v407, %v456
        %v460 = vld [vmem:[%s278] sm:$0x1]
        %v462 = vperm.slane %v460, 0
        %v464 = vadd.f32 %v458, %v462
        %v465 = vadd.f32 %v459, %v462
        %v466 = vmax.f32 %v464, 0.0
        %v467 = vmax.f32 %v465, 0.0
        %v468 = vpack.c.bf16 %v467, %v466
        %s469 = scalar_lea.vmem %s273, 128
        %v470 = vld [vmem:[%s469] sm:$0xff]
        %v471 = vld [vmem:[%s469 + $0x8] sm:$0xff]
        %v472 = vld [vmem:[%s469 + $0x10] sm:$0xff]
        %v473 = vld [vmem:[%s469 + $0x18] sm:$0xff]
        %v474 = vld [vmem:[%s469 + $0x20] sm:$0xff]
        %v475 = vld [vmem:[%s469 + $0x28] sm:$0xff]
        %v476 = vld [vmem:[%s469 + $0x30] sm:$0xff]
        %v477 = vld [vmem:[%s469 + $0x38] sm:$0xff]
        %v478 = vld [vmem:[%s469 + $0x40] sm:$0xff]
        %v479 = vld [vmem:[%s469 + $0x48] sm:$0xff]
        %v480 = vld [vmem:[%s469 + $0x50] sm:$0xff]
        %v481 = vld [vmem:[%s469 + $0x58] sm:$0xff]
        %v482 = vld [vmem:[%s469 + $0x60] sm:$0xff]
        %v483 = vld [vmem:[%s469 + $0x68] sm:$0xff]
        %v484 = vld [vmem:[%s469 + $0x70] sm:$0xff]
        %v485 = vld [vmem:[%s469 + $0x78] sm:$0xff]
        %v502 = vunpack.c.l.b16 %v470
        %v503 = vunpack.c.h.b16 %v470
        %v504 = vunpack.c.l.b16 %v471
        %v505 = vunpack.c.h.b16 %v471
        %v506 = vunpack.c.l.b16 %v472
        %v507 = vunpack.c.h.b16 %v472
        %v508 = vunpack.c.l.b16 %v473
        %v509 = vunpack.c.h.b16 %v473
        %v510 = vunpack.c.l.b16 %v474
        %v511 = vunpack.c.h.b16 %v474
        %v512 = vunpack.c.l.b16 %v475
        %v513 = vunpack.c.h.b16 %v475
        %v514 = vunpack.c.l.b16 %v476
        %v515 = vunpack.c.h.b16 %v476
        %v516 = vunpack.c.l.b16 %v477
        %v517 = vunpack.c.h.b16 %v477
        %v518 = vunpack.c.l.b16 %v478
        %v519 = vunpack.c.h.b16 %v478
        %v520 = vunpack.c.l.b16 %v479
        %v521 = vunpack.c.h.b16 %v479
        %v522 = vunpack.c.l.b16 %v480
        %v523 = vunpack.c.h.b16 %v480
        %v524 = vunpack.c.l.b16 %v481
        %v525 = vunpack.c.h.b16 %v481
        %v526 = vunpack.c.l.b16 %v482
        %v527 = vunpack.c.h.b16 %v482
        %v528 = vunpack.c.l.b16 %v483
        %v529 = vunpack.c.h.b16 %v483
        %v530 = vunpack.c.l.b16 %v484
        %v531 = vunpack.c.h.b16 %v484
        %v532 = vunpack.c.l.b16 %v485
        %v533 = vunpack.c.h.b16 %v485
        %v534 = vpack.c.b16 %v504, %v502
        %v535 = vpack.c.b16 %v505, %v503
        %v536 = vpack.c.b16 %v508, %v506
        %v537 = vpack.c.b16 %v509, %v507
        %v538 = vpack.c.b16 %v512, %v510
        %v539 = vpack.c.b16 %v513, %v511
        %v540 = vpack.c.b16 %v516, %v514
        %v541 = vpack.c.b16 %v517, %v515
        %v542 = vpack.c.b16 %v520, %v518
        %v543 = vpack.c.b16 %v521, %v519
        %v544 = vpack.c.b16 %v524, %v522
        %v545 = vpack.c.b16 %v525, %v523
        %v546 = vpack.c.b16 %v528, %v526
        %v547 = vpack.c.b16 %v529, %v527
        %v548 = vpack.c.b16 %v532, %v530
        %v549 = vpack.c.b16 %v533, %v531
        %566 = vmatpush.bf16.msra.mxu0 %v548
        %567 = vmatpush.bf16.msra.mxu0 %v546
        %568 = vmatpush.bf16.msra.mxu0 %v544
        %569 = vmatpush.bf16.msra.mxu0 %v542
        %570 = vmatpush.bf16.msra.mxu0 %v540
        %571 = vmatpush.bf16.msra.mxu0 %v538
        %572 = vmatpush.bf16.msra.mxu0 %v536
        %573 = vmatpush.bf16.msra.mxu0 %v534
        %574 = vmatmul.bf16.gmra.mxu0 %v468
        %v575 = vpop.f32.mrf.mxu0
        %v576 = vadd.f32 0.0, %v575
        %v577 = vpop.f32.mrf.mxu0
        %v578 = vadd.f32 0.0, %v577
        %579 = vdwg.mxu0
        %580 = vmatpush.bf16.msra.mxu0 %v549
        %581 = vmatpush.bf16.msra.mxu0 %v547
        %582 = vmatpush.bf16.msra.mxu0 %v545
        %583 = vmatpush.bf16.msra.mxu0 %v543
        %584 = vmatpush.bf16.msra.mxu0 %v541
        %585 = vmatpush.bf16.msra.mxu0 %v539
        %586 = vmatpush.bf16.msra.mxu0 %v537
        %587 = vmatpush.bf16.msra.mxu0 %v535
        %588 = vmatmul.bf16.gmra.mxu0 %v468
        %v589 = vpop.f32.mrf.mxu0
        %v590 = vadd.f32 0.0, %v589
        %v591 = vpop.f32.mrf.mxu0
        %v592 = vadd.f32 0.0, %v591
        %593 = vdwg.mxu0
        %v594 = vpack.c.bf16 %v592, %v590
        %s595 = scalar_lea.vmem %s285, 16
        %v596 = vld [vmem:[%s595] sm:$0xf]
        %v597 = vld [vmem:[%s595 + $0x4] sm:$0xf]
        %v598 = vld [vmem:[%s595 + $0x8] sm:$0xf]
        %v599 = vld [vmem:[%s595 + $0xc] sm:$0xf]
        %v604 = vunpack.c.l.b16 %v596
        %v605 = vunpack.c.l.b16 %v597
        %v606 = vunpack.c.l.b16 %v598
        %v607 = vunpack.c.l.b16 %v599
        %v608 = vpack.c.b16 %v605, %v604
        %v609 = vpack.c.b16 %v607, %v606
        %v613 = vsel %vm440, %v594, 0
        %615 = vmatpush.bf16.msra.mxu0 0
        %616 = vmatpush.bf16.msra.mxu0 0
        %617 = vmatpush.bf16.msra.mxu0 0
        %618 = vmatpush.bf16.msra.mxu0 0
        %619 = vmatpush.bf16.msra.mxu0 0
        %620 = vmatpush.bf16.msra.mxu0 0
        %621 = vmatpush.bf16.msra.mxu0 %v609
        %622 = vmatpush.bf16.msra.mxu0 %v608
        %623 = vmatmul.bf16.gmra.mxu0 %v613
        %v624 = vpop.f32.mrf.mxu0
        %v625 = vadd.f32 0.0, %v624
        %v626 = vpop.f32.mrf.mxu0
        %v627 = vadd.f32 0.0, %v626
        %628 = vdwg.mxu0
        %v629 = vadd.f32 %v576, %v625
        %v630 = vadd.f32 %v578, %v627
        %s631 = scalar_lea.vmem %s278, 1
        %v632 = vld [vmem:[%s631] sm:$0x1]
        %v634 = vperm.slane %v632, 0
        %v636 = vadd.f32 %v629, %v634
        %v637 = vadd.f32 %v630, %v634
        %v638 = vmax.f32 %v636, 0.0
        %v639 = vmax.f32 %v637, 0.0
        %v640 = vpack.c.bf16 %v639, %v638
        %s641 = scalar_lea.vmem %s273, 256
        %v642 = vld [vmem:[%s641] sm:$0xff]
        %v643 = vld [vmem:[%s641 + $0x8] sm:$0xff]
        %v644 = vld [vmem:[%s641 + $0x10] sm:$0xff]
        %v645 = vld [vmem:[%s641 + $0x18] sm:$0xff]
        %v646 = vld [vmem:[%s641 + $0x20] sm:$0xff]
        %v647 = vld [vmem:[%s641 + $0x28] sm:$0xff]
        %v648 = vld [vmem:[%s641 + $0x30] sm:$0xff]
        %v649 = vld [vmem:[%s641 + $0x38] sm:$0xff]
        %v650 = vld [vmem:[%s641 + $0x40] sm:$0xff]
        %v651 = vld [vmem:[%s641 + $0x48] sm:$0xff]
        %v652 = vld [vmem:[%s641 + $0x50] sm:$0xff]
        %v653 = vld [vmem:[%s641 + $0x58] sm:$0xff]
        %v654 = vld [vmem:[%s641 + $0x60] sm:$0xff]
        %v655 = vld [vmem:[%s641 + $0x68] sm:$0xff]
        %v656 = vld [vmem:[%s641 + $0x70] sm:$0xff]
        %v657 = vld [vmem:[%s641 + $0x78] sm:$0xff]
        %v674 = vunpack.c.l.b16 %v642
        %v675 = vunpack.c.h.b16 %v642
        %v676 = vunpack.c.l.b16 %v643
        %v677 = vunpack.c.h.b16 %v643
        %v678 = vunpack.c.l.b16 %v644
        %v679 = vunpack.c.h.b16 %v644
        %v680 = vunpack.c.l.b16 %v645
        %v681 = vunpack.c.h.b16 %v645
        %v682 = vunpack.c.l.b16 %v646
        %v683 = vunpack.c.h.b16 %v646
        %v684 = vunpack.c.l.b16 %v647
        %v685 = vunpack.c.h.b16 %v647
        %v686 = vunpack.c.l.b16 %v648
        %v687 = vunpack.c.h.b16 %v648
        %v688 = vunpack.c.l.b16 %v649
        %v689 = vunpack.c.h.b16 %v649
        %v690 = vunpack.c.l.b16 %v650
        %v691 = vunpack.c.h.b16 %v650
        %v692 = vunpack.c.l.b16 %v651
        %v693 = vunpack.c.h.b16 %v651
        %v694 = vunpack.c.l.b16 %v652
        %v695 = vunpack.c.h.b16 %v652
        %v696 = vunpack.c.l.b16 %v653
        %v697 = vunpack.c.h.b16 %v653
        %v698 = vunpack.c.l.b16 %v654
        %v699 = vunpack.c.h.b16 %v654
        %v700 = vunpack.c.l.b16 %v655
        %v701 = vunpack.c.h.b16 %v655
        %v702 = vunpack.c.l.b16 %v656
        %v703 = vunpack.c.h.b16 %v656
        %v704 = vunpack.c.l.b16 %v657
        %v705 = vunpack.c.h.b16 %v657
        %v706 = vpack.c.b16 %v676, %v674
        %v707 = vpack.c.b16 %v677, %v675
        %v708 = vpack.c.b16 %v680, %v678
        %v709 = vpack.c.b16 %v681, %v679
        %v710 = vpack.c.b16 %v684, %v682
        %v711 = vpack.c.b16 %v685, %v683
        %v712 = vpack.c.b16 %v688, %v686
        %v713 = vpack.c.b16 %v689, %v687
        %v714 = vpack.c.b16 %v692, %v690
        %v715 = vpack.c.b16 %v693, %v691
        %v716 = vpack.c.b16 %v696, %v694
        %v717 = vpack.c.b16 %v697, %v695
        %v718 = vpack.c.b16 %v700, %v698
        %v719 = vpack.c.b16 %v701, %v699
        %v720 = vpack.c.b16 %v704, %v702
        %v721 = vpack.c.b16 %v705, %v703
        %738 = vmatpush.bf16.msra.mxu0 %v720
        %739 = vmatpush.bf16.msra.mxu0 %v718
        %740 = vmatpush.bf16.msra.mxu0 %v716
        %741 = vmatpush.bf16.msra.mxu0 %v714
        %742 = vmatpush.bf16.msra.mxu0 %v712
        %743 = vmatpush.bf16.msra.mxu0 %v710
        %744 = vmatpush.bf16.msra.mxu0 %v708
        %745 = vmatpush.bf16.msra.mxu0 %v706
        %746 = vmatmul.bf16.gmra.mxu0 %v640
        %v747 = vpop.f32.mrf.mxu0
        %v748 = vadd.f32 0.0, %v747
        %v749 = vpop.f32.mrf.mxu0
        %v750 = vadd.f32 0.0, %v749
        %751 = vdwg.mxu0
        %752 = vmatpush.bf16.msra.mxu0 %v721
        %753 = vmatpush.bf16.msra.mxu0 %v719
        %754 = vmatpush.bf16.msra.mxu0 %v717
        %755 = vmatpush.bf16.msra.mxu0 %v715
        %756 = vmatpush.bf16.msra.mxu0 %v713
        %757 = vmatpush.bf16.msra.mxu0 %v711
        %758 = vmatpush.bf16.msra.mxu0 %v709
        %759 = vmatpush.bf16.msra.mxu0 %v707
        %760 = vmatmul.bf16.gmra.mxu0 %v640
        %v761 = vpop.f32.mrf.mxu0
        %v762 = vadd.f32 0.0, %v761
        %v763 = vpop.f32.mrf.mxu0
        %v764 = vadd.f32 0.0, %v763
        %765 = vdwg.mxu0
        %v766 = vpack.c.bf16 %v764, %v762
        %s767 = scalar_lea.vmem %s285, 32
        %v768 = vld [vmem:[%s767] sm:$0xf]
        %v769 = vld [vmem:[%s767 + $0x4] sm:$0xf]
        %v770 = vld [vmem:[%s767 + $0x8] sm:$0xf]
        %v771 = vld [vmem:[%s767 + $0xc] sm:$0xf]
        %v776 = vunpack.c.l.b16 %v768
        %v777 = vunpack.c.l.b16 %v769
        %v778 = vunpack.c.l.b16 %v770
        %v779 = vunpack.c.l.b16 %v771
        %v780 = vpack.c.b16 %v777, %v776
        %v781 = vpack.c.b16 %v779, %v778
        %v785 = vsel %vm440, %v766, 0
        %787 = vmatpush.bf16.msra.mxu0 0
        %788 = vmatpush.bf16.msra.mxu0 0
        %789 = vmatpush.bf16.msra.mxu0 0
        %790 = vmatpush.bf16.msra.mxu0 0
        %791 = vmatpush.bf16.msra.mxu0 0
        %792 = vmatpush.bf16.msra.mxu0 0
        %793 = vmatpush.bf16.msra.mxu0 %v781
        %794 = vmatpush.bf16.msra.mxu0 %v780
        %795 = vmatmul.bf16.gmra.mxu0 %v785
        %v796 = vpop.f32.mrf.mxu0
        %v797 = vadd.f32 0.0, %v796
        %v798 = vpop.f32.mrf.mxu0
        %v799 = vadd.f32 0.0, %v798
        %800 = vdwg.mxu0
        %v801 = vadd.f32 %v748, %v797
        %v802 = vadd.f32 %v750, %v799
        %s803 = scalar_lea.vmem %s278, 2
        %v804 = vld [vmem:[%s803] sm:$0x1]
        %v806 = vperm.slane %v804, 0
        %v808 = vadd.f32 %v801, %v806
        %v809 = vadd.f32 %v802, %v806
        %v810 = vadd.f32 %v808, %v296
        %v811 = vadd.f32 %v809, %v297
        %p812 = scmp.lt.s32.totalorder %s18, 5
        // Predicated region
        $region49: #{qlora_bignet_forward.1} parent=43 // pred_check
          %p813 = pneg %p812
        $region50: #{qlora_bignet_forward.1} parent=43 // pred_check_branch
          %815 = sbr.rel (%p813) target = $region52
        $region51: #{qlora_bignet_forward.1} parent=43 // pred_region
          %816 = vadd.xlane.f32.xlu0 %v810
          %v817 = vpop.xlane.xlu0 %816
          %818 = vadd.xlane.f32.xlu0 %v811
          %v819 = vpop.xlane.xlu0 %818
          %v820 = vrcp.pop 128.0
          %v821 = vmul.f32 128.0, %v820
          %v822 = vsub.f32 1.0, %v821
          %v823 = vmul.f32 %v820, %v822
          %v824 = vadd.f32 %v820, %v823
          %vm825 = vweird.f32 %v820
          %v826 = vsel %vm825, %v820, %v824
          %v827 = vmul.f32 %v817, %v826
          %v828 = vmul.f32 %v819, %v826
          %v829 = vsub.f32 %v810, %v827
          %v830 = vsub.f32 %v811, %v828
          %v831 = vmul.f32 %v829, %v829
          %v832 = vmul.f32 %v830, %v830
          %833 = vadd.xlane.f32.xlu0 %v831
          %v834 = vpop.xlane.xlu0 %833
          %835 = vadd.xlane.f32.xlu0 %v832
          %v836 = vpop.xlane.xlu0 %835
          %v837 = vmul.f32 %v834, %v826
          %v838 = vmul.f32 %v836, %v826
          %v839 = vadd.f32 %v837, 1e-05
          %v840 = vadd.f32 %v838, 1e-05
          %v841 = vrsqrt.pop %v839
          %v842 = vmul.f32 %v841, %v839
          %v843 = vmul.f32 %v842, %v841
          %v844 = vmul.f32 0.5, %v843
          %v845 = vsub.f32 1.5, %v844
          %v846 = vmul.f32 %v841, %v845
          %vm847 = vweird.f32 %v839
          %vm848 = vweird.f32 %v841
          %vm849 = vmor %vm847, %vm848
          %v850 = vsel %vm849, %v841, %v846
          %v851 = vrsqrt.pop %v840
          %v852 = vmul.f32 %v851, %v840
          %v853 = vmul.f32 %v852, %v851
          %v854 = vmul.f32 0.5, %v853
          %v855 = vsub.f32 1.5, %v854
          %v856 = vmul.f32 %v851, %v855
          %vm857 = vweird.f32 %v840
          %vm858 = vweird.f32 %v851
          %vm859 = vmor %vm857, %vm858
          %v860 = vsel %vm859, %v851, %v856
          %v861 = vmul.f32 %v829, %v850
          %v862 = vmul.f32 %v830, %v860
          %s863 = scalar_lea.vmem %s4, %s18
          %v864 = vld [vmem:[%s863] sm:$0x1]
          %v866 = vperm.slane %v864, 0
          %v868 = vmul.f32 %v861, %v866
          %v869 = vmul.f32 %v862, %v866
          %s870 = scalar_lea.vmem %s5, %s18
          %v871 = vld [vmem:[%s870] sm:$0x1]
          %v873 = vperm.slane %v871, 0
          %v875 = vadd.f32 %v868, %v873
          %v876 = vadd.f32 %v869, %v873
          %877 = vst [vmem:[#allocation2] sm:$0xff] %v875
          %878 = vst [vmem:[#allocation2 + $0x8] sm:$0xff] %v876
        $region52: #{qlora_bignet_forward.1} parent=43 // pred_fallthru
          _
        %p879 = scmp.eq.s32.totalorder %s18, 5
        // Predicated region
        $region53: #{qlora_bignet_forward.1} parent=43 // pred_check
          %p880 = pneg %p879
        $region54: #{qlora_bignet_forward.1} parent=43 // pred_check_branch
          %882 = sbr.rel (%p880) target = $region56
        $region55: #{qlora_bignet_forward.1} parent=43 // pred_region
          %883 = vst [vmem:[#allocation3] sm:$0xff] %v810
          %884 = vst [vmem:[#allocation3 + $0x8] sm:$0xff] %v811
        $region56: #{qlora_bignet_forward.1} parent=43 // pred_fallthru
          _
        // Predicated region
        $region57: #{qlora_bignet_forward.1} parent=43 // pred_check
          %p885 = pneg %p172
        $region58: #{qlora_bignet_forward.1} parent=43 // pred_check_branch
          %887 = sbr.rel (%p885) target = $region60
        $region59: #{qlora_bignet_forward.1} parent=43 // pred_region
          %889 = vsyncadd [#allocation4], 0
          %s890 = sshll.u32 [#allocation3], 4
          %s891 = int_to_ptr.vmem [resolvable:$true] %s890
          %s892 = sshll.u32 %s6, 4
          %s893 = int_to_ptr.hbm [resolvable:$true] %s892
          %898 = dma.vmem_to_hbm [thread:$0]  %s891, 256, %s893, [#allocation4], 128, 128, 8
        $region60: #{qlora_bignet_forward.1} parent=43 // pred_fallthru
          _
        // Predicated region
        $region61: #{qlora_bignet_forward.1} parent=43 // pred_check
          %p899 = pneg %p172
        $region62: #{qlora_bignet_forward.1} parent=43 // pred_check_branch
          %901 = sbr.rel (%p899) target = $region64
        $region63: #{qlora_bignet_forward.1} parent=43 // pred_region
          %903 = dma.done [#allocation4], 256
        $region64: #{qlora_bignet_forward.1} parent=43 // pred_fallthru
          _
      $region44: #{qlora_bignet_forward.1} parent=5 // pred_fallthru
        _
      %p904 = scmp.le.s32.totalorder 2, %s13
      // Predicated region
      $region65: #{qlora_bignet_forward.1} parent=5 // pred_check
        %p905 = pneg %p904
      $region66: #{qlora_bignet_forward.1} parent=5 // pred_check_branch
        %907 = sbr.rel (%p905) target = $region68
      $region67: #{qlora_bignet_forward.1} parent=5 // pred_region
        %s908 = ssub.s32 %s13, 2
      $region68: #{qlora_bignet_forward.1} parent=5 // pred_fallthru
        _
    $region6: #{qlora_bignet_forward.1} parent=1 // loop_footer
      %s17 = sadd.s32 1, %s13
    $region7: #{qlora_bignet_forward.1} parent=1 // loop_footer_branch
      %12 = sbr.rel target = $region3
    $region8: #{qlora_bignet_forward.1} parent=1 // loop_exit
      _
    %909 = vsyncpa [#allocation4], 1
    %s910 = scalar_lea.sflag [#allocation4], 1
    %911 = vsyncpa %s910, 1

</llo_original>
